<compile_context>
chip_gen: v6e
topology: v6e:2x2x1
jax: 0.10.0
libtpu: 0.0.40
codegen_flags: <defaults>
</compile_context>

<pallas_src>
import jax
import jax.numpy as jnp
from jax.experimental import pallas as pl
from jax.experimental.pallas import tpu as pltpu

# ---- model hyper-parameters (small, consistent with the module) -------------
X_SIZE = 3
Y_SIZE = 1
INPUT_SIZE = X_SIZE + Y_SIZE      # input_size = x_size + y_size
R_SIZE = 16                       # r_size
N_HIDDEN = 3                      # n_hidden (fcs1 has n_hidden+1 = 4 layers)
HIDDEN_SIZE = 32                  # hidden_size
N2_HIDDEN = 2                     # fixed in the module (fcs2 has 3 layers)
SELF_ATT = False

BATCH = 2
N_CONTEXT = 8                     # == f32 sublane tile -> tile-aligned reduce

N_LAYERS1 = N_HIDDEN + 1          # 4 layers in fcs1
N_LAYERS2 = N2_HIDDEN + 1         # 3 layers in fcs2
N_LAYERS = N_LAYERS1 + N_LAYERS2  # 7 packed linear layers total
PAD = max(HIDDEN_SIZE, 2 * R_SIZE, INPUT_SIZE)   # common padded width = 32
SLAB_ROWS = PAD + 8               # 40 rows per layer slab (sublane-tile aligned)
BIAS_ROW = PAD                    # row 32: bias
MASK_ROW = PAD + 1                # row 33 (layer 0 only): mu-lane mask


def _softplus(x):
    # numerically stable; exp goes to the EUP slot, rest is VPU
    return jnp.log1p(jnp.exp(-jnp.abs(x))) + jnp.maximum(x, 0.0)


def latent_encoder_kernel(x_ref, y_ref, wb_ref, out_ref):
    """x_ref: [B*N, x_size]; y_ref: [B*N, y_size];
    wb_ref: [7, PAD+8, PAD] (weight rows | bias row | mask row, zero-padded);
    out_ref: [B, 2*R_SIZE] = [mu | sigma]."""

    def layer(i, t):
        slab = wb_ref[i]                                        # [40, 32] view
        return (jnp.dot(t, slab[:PAD], preferred_element_type=jnp.float32)
                + slab[BIAS_ROW:BIAS_ROW + 1])

    # ---- fcs1[0]: input(4) -> hidden(32) as VPU broadcast-FMAs (K=4 is far
    #      too small for a useful MXU pass) ----
    slab0 = wb_ref[0]
    xv = x_ref[...]                                             # [B*N, 3]
    h = y_ref[...] * slab0[X_SIZE:INPUT_SIZE]                   # y * W0[row 3]
    for k in range(X_SIZE):
        h = h + xv[:, k:k + 1] * slab0[k:k + 1]                 # x_k * W0[row k]
    h = jnp.maximum(h + slab0[BIAS_ROW:BIAS_ROW + 1], 0.0)      # [B*N, 32]

    # ---- fcs1[1:-1] with ReLU (MXU) ----
    for i in range(1, N_LAYERS1 - 1):                           # layers 1, 2
        h = jnp.maximum(layer(i, h), 0.0)                       # [B*N, 32]

    # ---- mean over context points: tile-aligned sublane reduce (XLU),
    #      commuted ahead of the linear fcs1[-1] layer ----
    hm = jnp.sum(h.reshape(BATCH, N_CONTEXT, PAD), axis=1) * (1.0 / N_CONTEXT)

    # ---- fcs1[-1]: hidden -> r_size (no activation; padded cols stay zero) ----
    r = layer(N_LAYERS1 - 1, hm)                                # [B, 32]

    # ---- fcs2[:-1] with ReLU ----
    for i in range(N_LAYERS1, N_LAYERS - 1):                    # layers 4, 5
        r = jnp.maximum(layer(i, r), 0.0)                       # [B, 32]

    # ---- fcs2[-1]: r -> 2r, columns are [mu | w] ----
    out = layer(N_LAYERS - 1, r)                                # [B, 32]

    # sigma on the w-head lanes, mu passed through; constant mask comes from
    # the parameter slab (no runtime iota), single lane-dense store.
    sig = 0.001 + 0.999 * _softplus(out)
    mask = slab0[MASK_ROW:MASK_ROW + 1]                         # [1,32], 1 on mu lanes
    out_ref[...] = sig + mask * (out - sig)


def init_params(key):
    """Deterministic synthetic parameters; weights stored [in, out]."""
    ks = jax.random.split(key, N_LAYERS)

    def lin(k, din, dout, scale=0.1):
        kw, kb = jax.random.split(k)
        return (scale * jax.random.normal(kw, (din, dout), jnp.float32),
                scale * jax.random.normal(kb, (1, dout), jnp.float32))

    params = []
    # fcs1: input -> h -> h -> h -> r
    dims1 = [INPUT_SIZE] + [HIDDEN_SIZE] * N_HIDDEN + [R_SIZE]
    for i in range(N_LAYERS1):
        params.append(lin(ks[i], dims1[i], dims1[i + 1]))
    # fcs2: r -> r -> r -> 2r
    for i in range(N2_HIDDEN):
        params.append(lin(ks[N_LAYERS1 + i], R_SIZE, R_SIZE))
    params.append(lin(ks[N_LAYERS - 1], R_SIZE, 2 * R_SIZE))
    return params


def pack_params(params):
    """Pack all 7 (w, b) pairs plus the mu-lane mask into one padded slab."""
    wb = jnp.zeros((N_LAYERS, SLAB_ROWS, PAD), jnp.float32)
    for i, (w, b) in enumerate(params):
        wb = wb.at[i, :w.shape[0], :w.shape[1]].set(w)
        wb = wb.at[i, BIAS_ROW, :b.shape[1]].set(b[0])
    mu_mask = (jnp.arange(PAD) < R_SIZE).astype(jnp.float32)
    wb = wb.at[0, MASK_ROW, :].set(mu_mask)
    return wb


def latent_encoder(x, y, wb_packed):
    """x: [B, N, x_size], y: [B, N, y_size] -> (mus_z [B, r], sigmas_z [B, r])."""
    B, N, _ = x.shape
    # contiguous reshapes are free bitcasts; no concat / pad on the launch path
    x2 = x.reshape(B * N, X_SIZE).astype(jnp.float32)
    y2 = y.reshape(B * N, Y_SIZE).astype(jnp.float32)

    vmem = pl.BlockSpec(memory_space=pltpu.MemorySpace.VMEM)

    # advisory cost hint: ~100 Kflop, a few dozen transcendentals, ~40 KiB moved
    cost = pl.CostEstimate(flops=100_000, transcendentals=64, bytes_accessed=40_960)

    out = pl.pallas_call(
        latent_encoder_kernel,
        out_shape=jax.ShapeDtypeStruct((B, 2 * R_SIZE), jnp.float32),
        in_specs=[vmem, vmem, vmem],
        out_specs=vmem,
        compiler_params=pltpu.CompilerParams(vmem_limit_bytes=2 * 1024 * 1024),
        cost_estimate=cost,
    )(x2, y2, wb_packed)

    return out[:, :R_SIZE], out[:, R_SIZE:]


def latent_encoder_ref(x, y, params):
    """Pure-JAX reference (mirrors the PyTorch ordering: mean AFTER fcs1[-1])."""
    xy = jnp.concatenate([x, y], axis=-1).astype(jnp.float32)
    h = xy.reshape(-1, INPUT_SIZE)
    for w, b in params[:N_LAYERS1 - 1]:
        h = jax.nn.relu(h @ w + b)
    w, b = params[N_LAYERS1 - 1]
    r = (h @ w + b).reshape(x.shape[0], -1, R_SIZE).mean(axis=1)
    for w, b in params[N_LAYERS1:N_LAYERS1 + N2_HIDDEN]:
        r = jax.nn.relu(r @ w + b)
    w, b = params[N_LAYERS - 1]
    out = r @ w + b
    mu, ws = out[:, :R_SIZE], out[:, R_SIZE:]
    sigma = 0.001 + 0.999 * jax.nn.softplus(ws)
    return mu, sigma


if __name__ == "__main__":
    key = jax.random.PRNGKey(0)
    kx, ky, kp = jax.random.split(key, 3)
    x = jax.random.normal(kx, (BATCH, N_CONTEXT, X_SIZE), jnp.float32)
    y = jax.random.normal(ky, (BATCH, N_CONTEXT, Y_SIZE), jnp.float32)
    params = init_params(kp)
    wb_packed = pack_params(params)

    mus, sigmas = latent_encoder(x, y, wb_packed)
    jax.block_until_ready((mus, sigmas))

    mus_ref, sigmas_ref = latent_encoder_ref(x, y, params)
    assert mus.shape == (BATCH, R_SIZE) and sigmas.shape == (BATCH, R_SIZE)
    # mean is commuted ahead of the (linear) last fcs1 layer and layer 0 is
    # decomposed into per-feature FMAs, so allow float-reassociation slack.
    assert jnp.allclose(mus, mus_ref, atol=1e-5, rtol=1e-4)
    assert jnp.allclose(sigmas, sigmas_ref, atol=1e-5, rtol=1e-4)
    assert bool(jnp.all(sigmas > 0.0))

    print("KERNEL_OK")
</pallas_src>

<mosaic_0001>
module attributes {stable_mosaic.version = 11 : i64} {
  func.func @latent_encoder_kernel(%arg0: memref<16x3xf32, #tpu.memory_space<vmem>>, %arg1: memref<16x1xf32, #tpu.memory_space<vmem>>, %arg2: memref<7x40x32xf32, #tpu.memory_space<vmem>>, %arg3: memref<2x32xf32, #tpu.memory_space<vmem>>) attributes {dimension_semantics = [], scalar_prefetch = 0 : i64, scratch_operands = 0 : i64, tpu.core_type = #tpu.core_type<tc>} {
    %c0 = arith.constant 0 : index
    %c0_0 = arith.constant 0 : index
    %c0_1 = arith.constant 0 : index
    %0 = vector.load %arg2[%c0, %c0_0, %c0_1] : memref<7x40x32xf32, #tpu.memory_space<vmem>>, vector<1x40x32xf32>
    %1 = vector.shape_cast %0 : vector<1x40x32xf32> to vector<40x32xf32>
    %c0_2 = arith.constant 0 : index
    %c0_3 = arith.constant 0 : index
    %2 = vector.load %arg0[%c0_2, %c0_3] : memref<16x3xf32, #tpu.memory_space<vmem>>, vector<16x3xf32>
    %c0_4 = arith.constant 0 : index
    %c0_5 = arith.constant 0 : index
    %3 = vector.load %arg1[%c0_4, %c0_5] : memref<16x1xf32, #tpu.memory_space<vmem>>, vector<16x1xf32>
    %4 = vector.extract_strided_slice %1 {offsets = [3, 0], sizes = [1, 32], strides = [1, 1]} : vector<40x32xf32> to vector<1x32xf32>
    %5 = vector.broadcast %3 : vector<16x1xf32> to vector<16x32xf32>
    %6 = vector.broadcast %4 : vector<1x32xf32> to vector<16x32xf32>
    %7 = arith.mulf %5, %6 : vector<16x32xf32>
    %8 = vector.extract_strided_slice %2 {offsets = [0, 0], sizes = [16, 1], strides = [1, 1]} : vector<16x3xf32> to vector<16x1xf32>
    %9 = vector.extract_strided_slice %1 {offsets = [0, 0], sizes = [1, 32], strides = [1, 1]} : vector<40x32xf32> to vector<1x32xf32>
    %10 = vector.broadcast %8 : vector<16x1xf32> to vector<16x32xf32>
    %11 = vector.broadcast %9 : vector<1x32xf32> to vector<16x32xf32>
    %12 = arith.mulf %10, %11 : vector<16x32xf32>
    %13 = arith.addf %7, %12 : vector<16x32xf32>
    %14 = vector.extract_strided_slice %2 {offsets = [0, 1], sizes = [16, 1], strides = [1, 1]} : vector<16x3xf32> to vector<16x1xf32>
    %15 = vector.extract_strided_slice %1 {offsets = [1, 0], sizes = [1, 32], strides = [1, 1]} : vector<40x32xf32> to vector<1x32xf32>
    %16 = vector.broadcast %14 : vector<16x1xf32> to vector<16x32xf32>
    %17 = vector.broadcast %15 : vector<1x32xf32> to vector<16x32xf32>
    %18 = arith.mulf %16, %17 : vector<16x32xf32>
    %19 = arith.addf %13, %18 : vector<16x32xf32>
    %20 = vector.extract_strided_slice %2 {offsets = [0, 2], sizes = [16, 1], strides = [1, 1]} : vector<16x3xf32> to vector<16x1xf32>
    %21 = vector.extract_strided_slice %1 {offsets = [2, 0], sizes = [1, 32], strides = [1, 1]} : vector<40x32xf32> to vector<1x32xf32>
    %22 = vector.broadcast %20 : vector<16x1xf32> to vector<16x32xf32>
    %23 = vector.broadcast %21 : vector<1x32xf32> to vector<16x32xf32>
    %24 = arith.mulf %22, %23 : vector<16x32xf32>
    %25 = arith.addf %19, %24 : vector<16x32xf32>
    %26 = vector.extract_strided_slice %1 {offsets = [32, 0], sizes = [1, 32], strides = [1, 1]} : vector<40x32xf32> to vector<1x32xf32>
    %27 = vector.broadcast %26 : vector<1x32xf32> to vector<16x32xf32>
    %28 = arith.addf %25, %27 : vector<16x32xf32>
    %cst = arith.constant 0.000000e+00 : f32
    %29 = vector.broadcast %cst : f32 to vector<16x32xf32>
    %30 = arith.maximumf %28, %29 : vector<16x32xf32>
    %c1 = arith.constant 1 : index
    %c0_6 = arith.constant 0 : index
    %c0_7 = arith.constant 0 : index
    %31 = vector.load %arg2[%c1, %c0_6, %c0_7] : memref<7x40x32xf32, #tpu.memory_space<vmem>>, vector<1x40x32xf32>
    %32 = vector.shape_cast %31 : vector<1x40x32xf32> to vector<40x32xf32>
    %33 = vector.extract_strided_slice %32 {offsets = [0, 0], sizes = [32, 32], strides = [1, 1]} : vector<40x32xf32> to vector<32x32xf32>
    %cst_8 = arith.constant dense<0.000000e+00> : vector<16x32xf32>
    %34 = tpu.matmul %30, %33, %cst_8 {dimension_numbers = #tpu.dot_dimension_numbers<[1], [0], [0], [1], [0, 0, 1, 1], [], []>} : vector<16x32xf32>, vector<32x32xf32>, vector<16x32xf32> -> vector<16x32xf32>
    %35 = vector.extract_strided_slice %32 {offsets = [32, 0], sizes = [1, 32], strides = [1, 1]} : vector<40x32xf32> to vector<1x32xf32>
    %36 = vector.broadcast %35 : vector<1x32xf32> to vector<16x32xf32>
    %37 = arith.addf %34, %36 : vector<16x32xf32>
    %cst_9 = arith.constant 0.000000e+00 : f32
    %38 = vector.broadcast %cst_9 : f32 to vector<16x32xf32>
    %39 = arith.maximumf %37, %38 : vector<16x32xf32>
    %c2 = arith.constant 2 : index
    %c0_10 = arith.constant 0 : index
    %c0_11 = arith.constant 0 : index
    %40 = vector.load %arg2[%c2, %c0_10, %c0_11] : memref<7x40x32xf32, #tpu.memory_space<vmem>>, vector<1x40x32xf32>
    %41 = vector.shape_cast %40 : vector<1x40x32xf32> to vector<40x32xf32>
    %42 = vector.extract_strided_slice %41 {offsets = [0, 0], sizes = [32, 32], strides = [1, 1]} : vector<40x32xf32> to vector<32x32xf32>
    %cst_12 = arith.constant dense<0.000000e+00> : vector<16x32xf32>
    %43 = tpu.matmul %39, %42, %cst_12 {dimension_numbers = #tpu.dot_dimension_numbers<[1], [0], [0], [1], [0, 0, 1, 1], [], []>} : vector<16x32xf32>, vector<32x32xf32>, vector<16x32xf32> -> vector<16x32xf32>
    %44 = vector.extract_strided_slice %41 {offsets = [32, 0], sizes = [1, 32], strides = [1, 1]} : vector<40x32xf32> to vector<1x32xf32>
    %45 = vector.broadcast %44 : vector<1x32xf32> to vector<16x32xf32>
    %46 = arith.addf %43, %45 : vector<16x32xf32>
    %cst_13 = arith.constant 0.000000e+00 : f32
    %47 = vector.broadcast %cst_13 : f32 to vector<16x32xf32>
    %48 = arith.maximumf %46, %47 : vector<16x32xf32>
    %49 = vector.shape_cast %48 : vector<16x32xf32> to vector<2x8x32xf32>
    %cst_14 = arith.constant dense<0.000000e+00> : vector<2x32xf32>
    %50 = vector.multi_reduction <add>, %49, %cst_14 [1] : vector<2x8x32xf32> to vector<2x32xf32>
    %cst_15 = arith.constant 1.250000e-01 : f32
    %51 = vector.broadcast %cst_15 : f32 to vector<2x32xf32>
    %52 = arith.mulf %50, %51 : vector<2x32xf32>
    %c3 = arith.constant 3 : index
    %c0_16 = arith.constant 0 : index
    %c0_17 = arith.constant 0 : index
    %53 = vector.load %arg2[%c3, %c0_16, %c0_17] : memref<7x40x32xf32, #tpu.memory_space<vmem>>, vector<1x40x32xf32>
    %54 = vector.shape_cast %53 : vector<1x40x32xf32> to vector<40x32xf32>
    %55 = vector.extract_strided_slice %54 {offsets = [0, 0], sizes = [32, 32], strides = [1, 1]} : vector<40x32xf32> to vector<32x32xf32>
    %cst_18 = arith.constant dense<0.000000e+00> : vector<2x32xf32>
    %56 = tpu.matmul %52, %55, %cst_18 {dimension_numbers = #tpu.dot_dimension_numbers<[1], [0], [0], [1], [0, 0, 1, 1], [], []>} : vector<2x32xf32>, vector<32x32xf32>, vector<2x32xf32> -> vector<2x32xf32>
    %57 = vector.extract_strided_slice %54 {offsets = [32, 0], sizes = [1, 32], strides = [1, 1]} : vector<40x32xf32> to vector<1x32xf32>
    %58 = vector.broadcast %57 : vector<1x32xf32> to vector<2x32xf32>
    %59 = arith.addf %56, %58 : vector<2x32xf32>
    %c4 = arith.constant 4 : index
    %c0_19 = arith.constant 0 : index
    %c0_20 = arith.constant 0 : index
    %60 = vector.load %arg2[%c4, %c0_19, %c0_20] : memref<7x40x32xf32, #tpu.memory_space<vmem>>, vector<1x40x32xf32>
    %61 = vector.shape_cast %60 : vector<1x40x32xf32> to vector<40x32xf32>
    %62 = vector.extract_strided_slice %61 {offsets = [0, 0], sizes = [32, 32], strides = [1, 1]} : vector<40x32xf32> to vector<32x32xf32>
    %cst_21 = arith.constant dense<0.000000e+00> : vector<2x32xf32>
    %63 = tpu.matmul %59, %62, %cst_21 {dimension_numbers = #tpu.dot_dimension_numbers<[1], [0], [0], [1], [0, 0, 1, 1], [], []>} : vector<2x32xf32>, vector<32x32xf32>, vector<2x32xf32> -> vector<2x32xf32>
    %64 = vector.extract_strided_slice %61 {offsets = [32, 0], sizes = [1, 32], strides = [1, 1]} : vector<40x32xf32> to vector<1x32xf32>
    %65 = vector.broadcast %64 : vector<1x32xf32> to vector<2x32xf32>
    %66 = arith.addf %63, %65 : vector<2x32xf32>
    %cst_22 = arith.constant 0.000000e+00 : f32
    %67 = vector.broadcast %cst_22 : f32 to vector<2x32xf32>
    %68 = arith.maximumf %66, %67 : vector<2x32xf32>
    %c5 = arith.constant 5 : index
    %c0_23 = arith.constant 0 : index
    %c0_24 = arith.constant 0 : index
    %69 = vector.load %arg2[%c5, %c0_23, %c0_24] : memref<7x40x32xf32, #tpu.memory_space<vmem>>, vector<1x40x32xf32>
    %70 = vector.shape_cast %69 : vector<1x40x32xf32> to vector<40x32xf32>
    %71 = vector.extract_strided_slice %70 {offsets = [0, 0], sizes = [32, 32], strides = [1, 1]} : vector<40x32xf32> to vector<32x32xf32>
    %cst_25 = arith.constant dense<0.000000e+00> : vector<2x32xf32>
    %72 = tpu.matmul %68, %71, %cst_25 {dimension_numbers = #tpu.dot_dimension_numbers<[1], [0], [0], [1], [0, 0, 1, 1], [], []>} : vector<2x32xf32>, vector<32x32xf32>, vector<2x32xf32> -> vector<2x32xf32>
    %73 = vector.extract_strided_slice %70 {offsets = [32, 0], sizes = [1, 32], strides = [1, 1]} : vector<40x32xf32> to vector<1x32xf32>
    %74 = vector.broadcast %73 : vector<1x32xf32> to vector<2x32xf32>
    %75 = arith.addf %72, %74 : vector<2x32xf32>
    %cst_26 = arith.constant 0.000000e+00 : f32
    %76 = vector.broadcast %cst_26 : f32 to vector<2x32xf32>
    %77 = arith.maximumf %75, %76 : vector<2x32xf32>
    %c6 = arith.constant 6 : index
    %c0_27 = arith.constant 0 : index
    %c0_28 = arith.constant 0 : index
    %78 = vector.load %arg2[%c6, %c0_27, %c0_28] : memref<7x40x32xf32, #tpu.memory_space<vmem>>, vector<1x40x32xf32>
    %79 = vector.shape_cast %78 : vector<1x40x32xf32> to vector<40x32xf32>
    %80 = vector.extract_strided_slice %79 {offsets = [0, 0], sizes = [32, 32], strides = [1, 1]} : vector<40x32xf32> to vector<32x32xf32>
    %cst_29 = arith.constant dense<0.000000e+00> : vector<2x32xf32>
    %81 = tpu.matmul %77, %80, %cst_29 {dimension_numbers = #tpu.dot_dimension_numbers<[1], [0], [0], [1], [0, 0, 1, 1], [], []>} : vector<2x32xf32>, vector<32x32xf32>, vector<2x32xf32> -> vector<2x32xf32>
    %82 = vector.extract_strided_slice %79 {offsets = [32, 0], sizes = [1, 32], strides = [1, 1]} : vector<40x32xf32> to vector<1x32xf32>
    %83 = vector.broadcast %82 : vector<1x32xf32> to vector<2x32xf32>
    %84 = arith.addf %81, %83 : vector<2x32xf32>
    %85 = math.absf %84 : vector<2x32xf32>
    %cst_30 = arith.constant 0.000000e+00 : f32
    %86 = vector.broadcast %cst_30 : f32 to vector<2x32xf32>
    %87 = arith.subf %86, %85 : vector<2x32xf32>
    %88 = math.exp %87 : vector<2x32xf32>
    %89 = math.log1p %88 : vector<2x32xf32>
    %cst_31 = arith.constant 0.000000e+00 : f32
    %90 = vector.broadcast %cst_31 : f32 to vector<2x32xf32>
    %91 = arith.maximumf %84, %90 : vector<2x32xf32>
    %92 = arith.addf %89, %91 : vector<2x32xf32>
    %cst_32 = arith.constant 9.990000e-01 : f32
    %93 = vector.broadcast %cst_32 : f32 to vector<2x32xf32>
    %94 = arith.mulf %93, %92 : vector<2x32xf32>
    %cst_33 = arith.constant 1.000000e-03 : f32
    %95 = vector.broadcast %cst_33 : f32 to vector<2x32xf32>
    %96 = arith.addf %95, %94 : vector<2x32xf32>
    %97 = vector.extract_strided_slice %1 {offsets = [33, 0], sizes = [1, 32], strides = [1, 1]} : vector<40x32xf32> to vector<1x32xf32>
    %98 = arith.subf %84, %96 : vector<2x32xf32>
    %99 = vector.broadcast %97 : vector<1x32xf32> to vector<2x32xf32>
    %100 = arith.mulf %99, %98 : vector<2x32xf32>
    %101 = arith.addf %96, %100 : vector<2x32xf32>
    %c0_34 = arith.constant 0 : index
    %c0_35 = arith.constant 0 : index
    %102 = vector.load %arg3[%c0_34, %c0_35] : memref<2x32xf32, #tpu.memory_space<vmem>>, vector<2x32xf32>
    tpu.vector_store %arg3[%c0_34, %c0_35], %101 {strides = array<i32>} : memref<2x32xf32, #tpu.memory_space<vmem>>, vector<2x32xf32>,
    return
  }
}

</mosaic_0001>

<llo_original>
// kernel: tpu_custom_call.1
$region0: #{tpu_custom_call.1}
  #allocation0 [shape = 'u32[]', space=smem, size = 0x4, offset = 0x4, fixed_abs, tag = 'smem constant byte address 0x4 - core index']
  #allocation1 [shape = 'u32[144,128]{1,0:T(1,128)}', space=vmem, size = 0x12000, scoped, tag = 'internal scratch']
  %s0 = inlined_call_operand.vmem [shape: f32[16,3], index: 0, kind: input, shape index: {}]
  %s1 = inlined_call_operand.vmem [shape: f32[16,1], index: 1, kind: input, shape index: {}]
  %s2 = inlined_call_operand.vmem [shape: f32[7,40,32], index: 2, kind: input, shape index: {}]
  %s3 = inlined_call_operand.hbm [shape: f32[2,32], index: 3, kind: output, shape index: {}]
  %s4 = sld [smem:[#allocation0]]
  $region22: #{tpu_custom_call.1} parent=0
    _
  %s6 = ssub.s32 1, %s4
  %s7 = scalar_select 0, %s6, %s4
  $region1: #{tpu_custom_call.1} parent=0
    #allocation2 [shape = 'u8[1024]{0}', space=vmem, size = 0x400, scoped, tag = 'output window, operand 0, single buffered']
    #allocation3 [shape = 's32[1]{0}', space=sflag, size = 0x4, scoped, tag = 'scoped memory for tpu_custom_call.1']
    %8 = vsyncpa [#allocation3], 0
    // Predicated region
    $region2: #{tpu_custom_call.1} parent=1 // pred_check
      _
    $region3: #{tpu_custom_call.1} parent=1 // pred_check_branch
      %10 = sbr.rel (0) target = $region5
    $region4: #{tpu_custom_call.1} parent=1 // pred_region
      _
    $region5: #{tpu_custom_call.1} parent=1 // pred_fallthru
      _
    // Predicated region
    $region6: #{tpu_custom_call.1} parent=1 // pred_check
      _
    $region7: #{tpu_custom_call.1} parent=1 // pred_check_branch
      %12 = sbr.rel (0) target = $region9
    $region8: #{tpu_custom_call.1} parent=1 // pred_region
      _
    $region9: #{tpu_custom_call.1} parent=1 // pred_fallthru
      _
    // Predicated region
    $region10: #{tpu_custom_call.1} parent=1 // pred_check
      _
    $region11: #{tpu_custom_call.1} parent=1 // pred_check_branch
      %14 = sbr.rel (0) target = $region13
    $region12: #{tpu_custom_call.1} parent=1 // pred_region
      _
    $region13: #{tpu_custom_call.1} parent=1 // pred_fallthru
      _
    %v15 = vld [vmem:[%s2] sm:$0xff]
    %v16 = vld [vmem:[%s2 + $0x20] sm:$0xff]
    %v17 = vld [vmem:[%s0] sm:$0xff]
    %v18 = vld [vmem:[%s0 + $0x8] sm:$0xff]
    %v19 = vld [vmem:[%s1] sm:$0xff]
    %v20 = vld [vmem:[%s1 + $0x8] sm:$0xff]
    %22 = vset.pattern.permute.xlu0 0
    %23 = vperm.xlu0 %22, %v19
    %v24 = vpop.permute.xlu0 %23
    %27 = vset.pattern.permute.xlu0 0
    %28 = vperm.xlu0 %27, %v20
    %v29 = vpop.permute.xlu0 %28
    %v31 = vlaneseq
    %v32 = vshrl.u32 %v31, 7
    %v33 = vsub.s32 3, %v32
    %v34 = vrot.slane %v15, %v33
    %v35 = vmul.f32 %v24, %v34
    %v36 = vmul.f32 %v29, %v34
    %38 = vset.pattern.permute.xlu0 0
    %39 = vperm.xlu0 %38, %v17
    %v40 = vpop.permute.xlu0 %39
    %43 = vset.pattern.permute.xlu0 0
    %44 = vperm.xlu0 %43, %v18
    %v45 = vpop.permute.xlu0 %44
    %v47 = vlaneseq
    %v48 = vshrl.u32 %v47, 7
    %v49 = vsub.s32 0, %v48
    %v50 = vrot.slane %v15, %v49
    %v51 = vmul.f32 %v40, %v50
    %v52 = vmul.f32 %v45, %v50
    %v53 = vadd.f32 %v35, %v51
    %v54 = vadd.f32 %v36, %v52
    %55 = vset.pattern.permute.xlu0 1
    %56 = vperm.xlu0 %55, %v17
    %v57 = vpop.permute.xlu0 %56
    %59 = vset.pattern.permute.xlu0 1
    %60 = vperm.xlu0 %59, %v18
    %v61 = vpop.permute.xlu0 %60
    %v63 = vlaneseq
    %v64 = vshrl.u32 %v63, 7
    %v65 = vsub.s32 1, %v64
    %v66 = vrot.slane %v15, %v65
    %v67 = vmul.f32 %v57, %v66
    %v68 = vmul.f32 %v61, %v66
    %v69 = vadd.f32 %v53, %v67
    %v70 = vadd.f32 %v54, %v68
    %71 = vset.pattern.permute.xlu0 2
    %72 = vperm.xlu0 %71, %v17
    %v73 = vpop.permute.xlu0 %72
    %75 = vset.pattern.permute.xlu0 2
    %76 = vperm.xlu0 %75, %v18
    %v77 = vpop.permute.xlu0 %76
    %v79 = vlaneseq
    %v80 = vshrl.u32 %v79, 7
    %v81 = vsub.s32 2, %v80
    %v82 = vrot.slane %v15, %v81
    %v83 = vmul.f32 %v73, %v82
    %v84 = vmul.f32 %v77, %v82
    %v85 = vadd.f32 %v69, %v83
    %v86 = vadd.f32 %v70, %v84
    %v87 = vlaneseq
    %v88 = vshrl.u32 %v87, 7
    %v89 = vsub.s32 0, %v88
    %v90 = vrot.slane %v16, %v89
    %v91 = vadd.f32 %v85, %v90
    %v92 = vadd.f32 %v86, %v90
    %v93 = vmax.f32 %v91, 0.0
    %v94 = vmax.f32 %v92, 0.0
    %s95 = scalar_lea.vmem %s2, 40
    %v96 = vld [vmem:[%s95] sm:$0xff]
    %v97 = vld [vmem:[%s95 + $0x8] sm:$0xff]
    %v98 = vld [vmem:[%s95 + $0x10] sm:$0xff]
    %v99 = vld [vmem:[%s95 + $0x18] sm:$0xff]
    %v100 = vld [vmem:[%s95 + $0x20] sm:$0xff]
    %v101 = vlaneseq
    %v102 = vshrl.u32 %v101, 7
    %v103 = vsub.s32 0, %v102
    %v104 = vrot.slane %v100, %v103
    %vm105 = vcmask 261120
    %v107 = vsel %vm105, %v93, 0
    %v110 = vsel %vm105, %v94, 0
    %112 = vmatprep.subr.mxu0 0.0
    %113 = vmatpush1.msra.mxu0 0.0
    %114 = vmatprep.subr.mxu0 0.0
    %115 = vmatpush1.msra.mxu0 0.0
    %116 = vmatprep.subr.mxu0 0.0
    %117 = vmatpush1.msra.mxu0 0.0
    %118 = vmatprep.subr.mxu0 0.0
    %119 = vmatpush1.msra.mxu0 0.0
    %120 = vmatprep.subr.mxu0 0.0
    %121 = vmatpush1.msra.mxu0 0.0
    %122 = vmatprep.subr.mxu0 0.0
    %123 = vmatpush1.msra.mxu0 0.0
    %124 = vmatprep.subr.mxu0 0.0
    %125 = vmatpush1.msra.mxu0 0.0
    %126 = vmatprep.subr.mxu0 0.0
    %127 = vmatpush1.msra.mxu0 0.0
    %128 = vmatprep.subr.mxu0 0.0
    %129 = vmatpush1.msra.mxu0 0.0
    %130 = vmatprep.subr.mxu0 0.0
    %131 = vmatpush1.msra.mxu0 0.0
    %132 = vmatprep.subr.mxu0 0.0
    %133 = vmatpush1.msra.mxu0 0.0
    %134 = vmatprep.subr.mxu0 0.0
    %135 = vmatpush1.msra.mxu0 0.0
    %136 = vmatprep.subr.mxu0 0.0
    %137 = vmatpush1.msra.mxu0 %v99
    %138 = vmatprep.subr.mxu0 0.0
    %139 = vmatpush1.msra.mxu0 %v98
    %140 = vmatprep.subr.mxu0 0.0
    %141 = vmatpush1.msra.mxu0 %v97
    %142 = vmatprep.subr.mxu0 0.0
    %143 = vmatpush1.msra.mxu0 %v96
    %144 = vmatprep.subr.mxu0 0.0
    %145 = vmatpush2.msra.mxu0 0.0
    %146 = vmatprep.subr.mxu0 0.0
    %147 = vmatpush2.msra.mxu0 0.0
    %148 = vmatprep.subr.mxu0 0.0
    %149 = vmatpush2.msra.mxu0 0.0
    %150 = vmatprep.subr.mxu0 0.0
    %151 = vmatpush2.msra.mxu0 0.0
    %152 = vmatprep.subr.mxu0 0.0
    %153 = vmatpush2.msra.mxu0 0.0
    %154 = vmatprep.subr.mxu0 0.0
    %155 = vmatpush2.msra.mxu0 0.0
    %156 = vmatprep.subr.mxu0 0.0
    %157 = vmatpush2.msra.mxu0 0.0
    %158 = vmatprep.subr.mxu0 0.0
    %159 = vmatpush2.msra.mxu0 0.0
    %160 = vmatprep.subr.mxu0 0.0
    %161 = vmatpush2.msra.mxu0 0.0
    %162 = vmatprep.subr.mxu0 0.0
    %163 = vmatpush2.msra.mxu0 0.0
    %164 = vmatprep.subr.mxu0 0.0
    %165 = vmatpush2.msra.mxu0 0.0
    %166 = vmatprep.subr.mxu0 0.0
    %167 = vmatpush2.msra.mxu0 0.0
    %168 = vmatprep.subr.mxu0 0.0
    %169 = vmatpush2.msra.mxu0 0.0
    %170 = vmatprep.subr.mxu0 0.0
    %171 = vmatpush2.msra.mxu0 0.0
    %172 = vmatprep.subr.mxu0 0.0
    %173 = vmatpush2.msra.mxu0 0.0
    %174 = vmatprep.subr.mxu0 0.0
    %175 = vmatpush2.msra.mxu0 0.0
    %176 = vmatprep.mubr.f32.mxu0 0.0
    %177 = vmatmul.mubr.f32.gmra.mxu0 %v107
    %v178 = vpop.f32.mrf.mxu0
    %v179 = vadd.f32 %v104, %v178
    %v180 = vpop.f32.mrf.mxu0
    %181 = vmatprep.mubr.f32.mxu0 0.0
    %182 = vmatmul.mubr.f32.gmra.mxu0 %v110
    %v183 = vpop.f32.mrf.mxu0
    %v184 = vadd.f32 %v104, %v183
    %v185 = vpop.f32.mrf.mxu0
    %186 = vdwg.mxu0
    %v187 = vmax.f32 %v179, 0.0
    %v188 = vmax.f32 %v184, 0.0
    %s189 = scalar_lea.vmem %s2, 80
    %v190 = vld [vmem:[%s189] sm:$0xff]
    %v191 = vld [vmem:[%s189 + $0x8] sm:$0xff]
    %v192 = vld [vmem:[%s189 + $0x10] sm:$0xff]
    %v193 = vld [vmem:[%s189 + $0x18] sm:$0xff]
    %v194 = vld [vmem:[%s189 + $0x20] sm:$0xff]
    %v195 = vlaneseq
    %v196 = vshrl.u32 %v195, 7
    %v197 = vsub.s32 0, %v196
    %v198 = vrot.slane %v194, %v197
    %v200 = vsel %vm105, %v187, 0
    %v203 = vsel %vm105, %v188, 0
    %205 = vmatprep.subr.mxu0 0.0
    %206 = vmatpush1.msra.mxu0 0.0
    %207 = vmatprep.subr.mxu0 0.0
    %208 = vmatpush1.msra.mxu0 0.0
    %209 = vmatprep.subr.mxu0 0.0
    %210 = vmatpush1.msra.mxu0 0.0
    %211 = vmatprep.subr.mxu0 0.0
    %212 = vmatpush1.msra.mxu0 0.0
    %213 = vmatprep.subr.mxu0 0.0
    %214 = vmatpush1.msra.mxu0 0.0
    %215 = vmatprep.subr.mxu0 0.0
    %216 = vmatpush1.msra.mxu0 0.0
    %217 = vmatprep.subr.mxu0 0.0
    %218 = vmatpush1.msra.mxu0 0.0
    %219 = vmatprep.subr.mxu0 0.0
    %220 = vmatpush1.msra.mxu0 0.0
    %221 = vmatprep.subr.mxu0 0.0
    %222 = vmatpush1.msra.mxu0 0.0
    %223 = vmatprep.subr.mxu0 0.0
    %224 = vmatpush1.msra.mxu0 0.0
    %225 = vmatprep.subr.mxu0 0.0
    %226 = vmatpush1.msra.mxu0 0.0
    %227 = vmatprep.subr.mxu0 0.0
    %228 = vmatpush1.msra.mxu0 0.0
    %229 = vmatprep.subr.mxu0 0.0
    %230 = vmatpush1.msra.mxu0 %v193
    %231 = vmatprep.subr.mxu0 0.0
    %232 = vmatpush1.msra.mxu0 %v192
    %233 = vmatprep.subr.mxu0 0.0
    %234 = vmatpush1.msra.mxu0 %v191
    %235 = vmatprep.subr.mxu0 0.0
    %236 = vmatpush1.msra.mxu0 %v190
    %237 = vmatprep.subr.mxu0 0.0
    %238 = vmatpush2.msra.mxu0 0.0
    %239 = vmatprep.subr.mxu0 0.0
    %240 = vmatpush2.msra.mxu0 0.0
    %241 = vmatprep.subr.mxu0 0.0
    %242 = vmatpush2.msra.mxu0 0.0
    %243 = vmatprep.subr.mxu0 0.0
    %244 = vmatpush2.msra.mxu0 0.0
    %245 = vmatprep.subr.mxu0 0.0
    %246 = vmatpush2.msra.mxu0 0.0
    %247 = vmatprep.subr.mxu0 0.0
    %248 = vmatpush2.msra.mxu0 0.0
    %249 = vmatprep.subr.mxu0 0.0
    %250 = vmatpush2.msra.mxu0 0.0
    %251 = vmatprep.subr.mxu0 0.0
    %252 = vmatpush2.msra.mxu0 0.0
    %253 = vmatprep.subr.mxu0 0.0
    %254 = vmatpush2.msra.mxu0 0.0
    %255 = vmatprep.subr.mxu0 0.0
    %256 = vmatpush2.msra.mxu0 0.0
    %257 = vmatprep.subr.mxu0 0.0
    %258 = vmatpush2.msra.mxu0 0.0
    %259 = vmatprep.subr.mxu0 0.0
    %260 = vmatpush2.msra.mxu0 0.0
    %261 = vmatprep.subr.mxu0 0.0
    %262 = vmatpush2.msra.mxu0 0.0
    %263 = vmatprep.subr.mxu0 0.0
    %264 = vmatpush2.msra.mxu0 0.0
    %265 = vmatprep.subr.mxu0 0.0
    %266 = vmatpush2.msra.mxu0 0.0
    %267 = vmatprep.subr.mxu0 0.0
    %268 = vmatpush2.msra.mxu0 0.0
    %269 = vmatprep.mubr.f32.mxu0 0.0
    %270 = vmatmul.mubr.f32.gmra.mxu0 %v200
    %v271 = vpop.f32.mrf.mxu0
    %v272 = vadd.f32 %v198, %v271
    %v273 = vpop.f32.mrf.mxu0
    %274 = vmatprep.mubr.f32.mxu0 0.0
    %275 = vmatmul.mubr.f32.gmra.mxu0 %v203
    %v276 = vpop.f32.mrf.mxu0
    %v277 = vadd.f32 %v198, %v276
    %v278 = vpop.f32.mrf.mxu0
    %279 = vdwg.mxu0
    %v280 = vmax.f32 %v272, 0.0
    %v281 = vmax.f32 %v277, 0.0
    %v282 = vsel %vm105, %v280, 0.0
    %v283 = vrot.slane %v282, 4
    %v284 = vadd.f32 %v282, %v283
    %v285 = vrot.slane %v284, 2
    %v286 = vadd.f32 %v284, %v285
    %v287 = vrot.slane %v286, 1
    %v288 = vadd.f32 %v286, %v287
    %v289 = vsel %vm105, %v281, 0.0
    %v290 = vrot.slane %v289, 4
    %v291 = vadd.f32 %v289, %v290
    %v292 = vrot.slane %v291, 2
    %v293 = vadd.f32 %v291, %v292
    %v294 = vrot.slane %v293, 1
    %v295 = vadd.f32 %v293, %v294
    %v296 = vmul.f32 %v288, 0.125
    %v297 = vmul.f32 %v295, 0.125
    %s298 = scalar_lea.vmem %s2, 120
    %v299 = vld [vmem:[%s298] sm:$0xff]
    %v300 = vld [vmem:[%s298 + $0x8] sm:$0xff]
    %v301 = vld [vmem:[%s298 + $0x10] sm:$0xff]
    %v302 = vld [vmem:[%s298 + $0x18] sm:$0xff]
    %v303 = vld [vmem:[%s298 + $0x20] sm:$0xff]
    %v304 = vlaneseq
    %v305 = vshrl.u32 %v304, 7
    %v306 = vsub.s32 0, %v305
    %v307 = vrot.slane %v303, %v306
    %vm310 = vcmask 1041409
    %v311 = vsel %vm310, %v297, %v296
    %v312 = vsel %vm105, %v311, 0
    %314 = vmatprep.subr.mxu0 0.0
    %315 = vmatpush1.msra.mxu0 0.0
    %316 = vmatprep.subr.mxu0 0.0
    %317 = vmatpush1.msra.mxu0 0.0
    %318 = vmatprep.subr.mxu0 0.0
    %319 = vmatpush1.msra.mxu0 0.0
    %320 = vmatprep.subr.mxu0 0.0
    %321 = vmatpush1.msra.mxu0 0.0
    %322 = vmatprep.subr.mxu0 0.0
    %323 = vmatpush1.msra.mxu0 0.0
    %324 = vmatprep.subr.mxu0 0.0
    %325 = vmatpush1.msra.mxu0 0.0
    %326 = vmatprep.subr.mxu0 0.0
    %327 = vmatpush1.msra.mxu0 0.0
    %328 = vmatprep.subr.mxu0 0.0
    %329 = vmatpush1.msra.mxu0 0.0
    %330 = vmatprep.subr.mxu0 0.0
    %331 = vmatpush1.msra.mxu0 0.0
    %332 = vmatprep.subr.mxu0 0.0
    %333 = vmatpush1.msra.mxu0 0.0
    %334 = vmatprep.subr.mxu0 0.0
    %335 = vmatpush1.msra.mxu0 0.0
    %336 = vmatprep.subr.mxu0 0.0
    %337 = vmatpush1.msra.mxu0 0.0
    %338 = vmatprep.subr.mxu0 0.0
    %339 = vmatpush1.msra.mxu0 %v302
    %340 = vmatprep.subr.mxu0 0.0
    %341 = vmatpush1.msra.mxu0 %v301
    %342 = vmatprep.subr.mxu0 0.0
    %343 = vmatpush1.msra.mxu0 %v300
    %344 = vmatprep.subr.mxu0 0.0
    %345 = vmatpush1.msra.mxu0 %v299
    %346 = vmatprep.subr.mxu0 0.0
    %347 = vmatpush2.msra.mxu0 0.0
    %348 = vmatprep.subr.mxu0 0.0
    %349 = vmatpush2.msra.mxu0 0.0
    %350 = vmatprep.subr.mxu0 0.0
    %351 = vmatpush2.msra.mxu0 0.0
    %352 = vmatprep.subr.mxu0 0.0
    %353 = vmatpush2.msra.mxu0 0.0
    %354 = vmatprep.subr.mxu0 0.0
    %355 = vmatpush2.msra.mxu0 0.0
    %356 = vmatprep.subr.mxu0 0.0
    %357 = vmatpush2.msra.mxu0 0.0
    %358 = vmatprep.subr.mxu0 0.0
    %359 = vmatpush2.msra.mxu0 0.0
    %360 = vmatprep.subr.mxu0 0.0
    %361 = vmatpush2.msra.mxu0 0.0
    %362 = vmatprep.subr.mxu0 0.0
    %363 = vmatpush2.msra.mxu0 0.0
    %364 = vmatprep.subr.mxu0 0.0
    %365 = vmatpush2.msra.mxu0 0.0
    %366 = vmatprep.subr.mxu0 0.0
    %367 = vmatpush2.msra.mxu0 0.0
    %368 = vmatprep.subr.mxu0 0.0
    %369 = vmatpush2.msra.mxu0 0.0
    %370 = vmatprep.subr.mxu0 0.0
    %371 = vmatpush2.msra.mxu0 0.0
    %372 = vmatprep.subr.mxu0 0.0
    %373 = vmatpush2.msra.mxu0 0.0
    %374 = vmatprep.subr.mxu0 0.0
    %375 = vmatpush2.msra.mxu0 0.0
    %376 = vmatprep.subr.mxu0 0.0
    %377 = vmatpush2.msra.mxu0 0.0
    %378 = vmatprep.mubr.f32.mxu0 0.0
    %379 = vmatmul.mubr.f32.gmra.mxu0 %v312
    %v380 = vpop.f32.mrf.mxu0
    %v381 = vadd.f32 %v307, %v380
    %v382 = vpop.f32.mrf.mxu0
    %383 = vdwg.mxu0
    %s384 = scalar_lea.vmem %s2, 160
    %v385 = vld [vmem:[%s384] sm:$0xff]
    %v386 = vld [vmem:[%s384 + $0x8] sm:$0xff]
    %v387 = vld [vmem:[%s384 + $0x10] sm:$0xff]
    %v388 = vld [vmem:[%s384 + $0x18] sm:$0xff]
    %v389 = vld [vmem:[%s384 + $0x20] sm:$0xff]
    %v390 = vlaneseq
    %v391 = vshrl.u32 %v390, 7
    %v392 = vsub.s32 0, %v391
    %v393 = vrot.slane %v389, %v392
    %v395 = vsel %vm105, %v381, 0
    %397 = vmatprep.subr.mxu0 0.0
    %398 = vmatpush1.msra.mxu0 0.0
    %399 = vmatprep.subr.mxu0 0.0
    %400 = vmatpush1.msra.mxu0 0.0
    %401 = vmatprep.subr.mxu0 0.0
    %402 = vmatpush1.msra.mxu0 0.0
    %403 = vmatprep.subr.mxu0 0.0
    %404 = vmatpush1.msra.mxu0 0.0
    %405 = vmatprep.subr.mxu0 0.0
    %406 = vmatpush1.msra.mxu0 0.0
    %407 = vmatprep.subr.mxu0 0.0
    %408 = vmatpush1.msra.mxu0 0.0
    %409 = vmatprep.subr.mxu0 0.0
    %410 = vmatpush1.msra.mxu0 0.0
    %411 = vmatprep.subr.mxu0 0.0
    %412 = vmatpush1.msra.mxu0 0.0
    %413 = vmatprep.subr.mxu0 0.0
    %414 = vmatpush1.msra.mxu0 0.0
    %415 = vmatprep.subr.mxu0 0.0
    %416 = vmatpush1.msra.mxu0 0.0
    %417 = vmatprep.subr.mxu0 0.0
    %418 = vmatpush1.msra.mxu0 0.0
    %419 = vmatprep.subr.mxu0 0.0
    %420 = vmatpush1.msra.mxu0 0.0
    %421 = vmatprep.subr.mxu0 0.0
    %422 = vmatpush1.msra.mxu0 %v388
    %423 = vmatprep.subr.mxu0 0.0
    %424 = vmatpush1.msra.mxu0 %v387
    %425 = vmatprep.subr.mxu0 0.0
    %426 = vmatpush1.msra.mxu0 %v386
    %427 = vmatprep.subr.mxu0 0.0
    %428 = vmatpush1.msra.mxu0 %v385
    %429 = vmatprep.subr.mxu0 0.0
    %430 = vmatpush2.msra.mxu0 0.0
    %431 = vmatprep.subr.mxu0 0.0
    %432 = vmatpush2.msra.mxu0 0.0
    %433 = vmatprep.subr.mxu0 0.0
    %434 = vmatpush2.msra.mxu0 0.0
    %435 = vmatprep.subr.mxu0 0.0
    %436 = vmatpush2.msra.mxu0 0.0
    %437 = vmatprep.subr.mxu0 0.0
    %438 = vmatpush2.msra.mxu0 0.0
    %439 = vmatprep.subr.mxu0 0.0
    %440 = vmatpush2.msra.mxu0 0.0
    %441 = vmatprep.subr.mxu0 0.0
    %442 = vmatpush2.msra.mxu0 0.0
    %443 = vmatprep.subr.mxu0 0.0
    %444 = vmatpush2.msra.mxu0 0.0
    %445 = vmatprep.subr.mxu0 0.0
    %446 = vmatpush2.msra.mxu0 0.0
    %447 = vmatprep.subr.mxu0 0.0
    %448 = vmatpush2.msra.mxu0 0.0
    %449 = vmatprep.subr.mxu0 0.0
    %450 = vmatpush2.msra.mxu0 0.0
    %451 = vmatprep.subr.mxu0 0.0
    %452 = vmatpush2.msra.mxu0 0.0
    %453 = vmatprep.subr.mxu0 0.0
    %454 = vmatpush2.msra.mxu0 0.0
    %455 = vmatprep.subr.mxu0 0.0
    %456 = vmatpush2.msra.mxu0 0.0
    %457 = vmatprep.subr.mxu0 0.0
    %458 = vmatpush2.msra.mxu0 0.0
    %459 = vmatprep.subr.mxu0 0.0
    %460 = vmatpush2.msra.mxu0 0.0
    %461 = vmatprep.mubr.f32.mxu0 0.0
    %462 = vmatmul.mubr.f32.gmra.mxu0 %v395
    %v463 = vpop.f32.mrf.mxu0
    %v464 = vadd.f32 %v393, %v463
    %v465 = vpop.f32.mrf.mxu0
    %466 = vdwg.mxu0
    %v467 = vmax.f32 %v464, 0.0
    %s468 = scalar_lea.vmem %s2, 200
    %v469 = vld [vmem:[%s468] sm:$0xff]
    %v470 = vld [vmem:[%s468 + $0x8] sm:$0xff]
    %v471 = vld [vmem:[%s468 + $0x10] sm:$0xff]
    %v472 = vld [vmem:[%s468 + $0x18] sm:$0xff]
    %v473 = vld [vmem:[%s468 + $0x20] sm:$0xff]
    %v474 = vlaneseq
    %v475 = vshrl.u32 %v474, 7
    %v476 = vsub.s32 0, %v475
    %v477 = vrot.slane %v473, %v476
    %v479 = vsel %vm105, %v467, 0
    %481 = vmatprep.subr.mxu0 0.0
    %482 = vmatpush1.msra.mxu0 0.0
    %483 = vmatprep.subr.mxu0 0.0
    %484 = vmatpush1.msra.mxu0 0.0
    %485 = vmatprep.subr.mxu0 0.0
    %486 = vmatpush1.msra.mxu0 0.0
    %487 = vmatprep.subr.mxu0 0.0
    %488 = vmatpush1.msra.mxu0 0.0
    %489 = vmatprep.subr.mxu0 0.0
    %490 = vmatpush1.msra.mxu0 0.0
    %491 = vmatprep.subr.mxu0 0.0
    %492 = vmatpush1.msra.mxu0 0.0
    %493 = vmatprep.subr.mxu0 0.0
    %494 = vmatpush1.msra.mxu0 0.0
    %495 = vmatprep.subr.mxu0 0.0
    %496 = vmatpush1.msra.mxu0 0.0
    %497 = vmatprep.subr.mxu0 0.0
    %498 = vmatpush1.msra.mxu0 0.0
    %499 = vmatprep.subr.mxu0 0.0
    %500 = vmatpush1.msra.mxu0 0.0
    %501 = vmatprep.subr.mxu0 0.0
    %502 = vmatpush1.msra.mxu0 0.0
    %503 = vmatprep.subr.mxu0 0.0
    %504 = vmatpush1.msra.mxu0 0.0
    %505 = vmatprep.subr.mxu0 0.0
    %506 = vmatpush1.msra.mxu0 %v472
    %507 = vmatprep.subr.mxu0 0.0
    %508 = vmatpush1.msra.mxu0 %v471
    %509 = vmatprep.subr.mxu0 0.0
    %510 = vmatpush1.msra.mxu0 %v470
    %511 = vmatprep.subr.mxu0 0.0
    %512 = vmatpush1.msra.mxu0 %v469
    %513 = vmatprep.subr.mxu0 0.0
    %514 = vmatpush2.msra.mxu0 0.0
    %515 = vmatprep.subr.mxu0 0.0
    %516 = vmatpush2.msra.mxu0 0.0
    %517 = vmatprep.subr.mxu0 0.0
    %518 = vmatpush2.msra.mxu0 0.0
    %519 = vmatprep.subr.mxu0 0.0
    %520 = vmatpush2.msra.mxu0 0.0
    %521 = vmatprep.subr.mxu0 0.0
    %522 = vmatpush2.msra.mxu0 0.0
    %523 = vmatprep.subr.mxu0 0.0
    %524 = vmatpush2.msra.mxu0 0.0
    %525 = vmatprep.subr.mxu0 0.0
    %526 = vmatpush2.msra.mxu0 0.0
    %527 = vmatprep.subr.mxu0 0.0
    %528 = vmatpush2.msra.mxu0 0.0
    %529 = vmatprep.subr.mxu0 0.0
    %530 = vmatpush2.msra.mxu0 0.0
    %531 = vmatprep.subr.mxu0 0.0
    %532 = vmatpush2.msra.mxu0 0.0
    %533 = vmatprep.subr.mxu0 0.0
    %534 = vmatpush2.msra.mxu0 0.0
    %535 = vmatprep.subr.mxu0 0.0
    %536 = vmatpush2.msra.mxu0 0.0
    %537 = vmatprep.subr.mxu0 0.0
    %538 = vmatpush2.msra.mxu0 0.0
    %539 = vmatprep.subr.mxu0 0.0
    %540 = vmatpush2.msra.mxu0 0.0
    %541 = vmatprep.subr.mxu0 0.0
    %542 = vmatpush2.msra.mxu0 0.0
    %543 = vmatprep.subr.mxu0 0.0
    %544 = vmatpush2.msra.mxu0 0.0
    %545 = vmatprep.mubr.f32.mxu0 0.0
    %546 = vmatmul.mubr.f32.gmra.mxu0 %v479
    %v547 = vpop.f32.mrf.mxu0
    %v548 = vadd.f32 %v477, %v547
    %v549 = vpop.f32.mrf.mxu0
    %550 = vdwg.mxu0
    %v551 = vmax.f32 %v548, 0.0
    %s552 = scalar_lea.vmem %s2, 240
    %v553 = vld [vmem:[%s552] sm:$0xff]
    %v554 = vld [vmem:[%s552 + $0x8] sm:$0xff]
    %v555 = vld [vmem:[%s552 + $0x10] sm:$0xff]
    %v556 = vld [vmem:[%s552 + $0x18] sm:$0xff]
    %v557 = vld [vmem:[%s552 + $0x20] sm:$0xff]
    %v558 = vlaneseq
    %v559 = vshrl.u32 %v558, 7
    %v560 = vsub.s32 0, %v559
    %v561 = vrot.slane %v557, %v560
    %v563 = vsel %vm105, %v551, 0
    %565 = vmatprep.subr.mxu0 0.0
    %566 = vmatpush1.msra.mxu0 0.0
    %567 = vmatprep.subr.mxu0 0.0
    %568 = vmatpush1.msra.mxu0 0.0
    %569 = vmatprep.subr.mxu0 0.0
    %570 = vmatpush1.msra.mxu0 0.0
    %571 = vmatprep.subr.mxu0 0.0
    %572 = vmatpush1.msra.mxu0 0.0
    %573 = vmatprep.subr.mxu0 0.0
    %574 = vmatpush1.msra.mxu0 0.0
    %575 = vmatprep.subr.mxu0 0.0
    %576 = vmatpush1.msra.mxu0 0.0
    %577 = vmatprep.subr.mxu0 0.0
    %578 = vmatpush1.msra.mxu0 0.0
    %579 = vmatprep.subr.mxu0 0.0
    %580 = vmatpush1.msra.mxu0 0.0
    %581 = vmatprep.subr.mxu0 0.0
    %582 = vmatpush1.msra.mxu0 0.0
    %583 = vmatprep.subr.mxu0 0.0
    %584 = vmatpush1.msra.mxu0 0.0
    %585 = vmatprep.subr.mxu0 0.0
    %586 = vmatpush1.msra.mxu0 0.0
    %587 = vmatprep.subr.mxu0 0.0
    %588 = vmatpush1.msra.mxu0 0.0
    %589 = vmatprep.subr.mxu0 0.0
    %590 = vmatpush1.msra.mxu0 %v556
    %591 = vmatprep.subr.mxu0 0.0
    %592 = vmatpush1.msra.mxu0 %v555
    %593 = vmatprep.subr.mxu0 0.0
    %594 = vmatpush1.msra.mxu0 %v554
    %595 = vmatprep.subr.mxu0 0.0
    %596 = vmatpush1.msra.mxu0 %v553
    %597 = vmatprep.subr.mxu0 0.0
    %598 = vmatpush2.msra.mxu0 0.0
    %599 = vmatprep.subr.mxu0 0.0
    %600 = vmatpush2.msra.mxu0 0.0
    %601 = vmatprep.subr.mxu0 0.0
    %602 = vmatpush2.msra.mxu0 0.0
    %603 = vmatprep.subr.mxu0 0.0
    %604 = vmatpush2.msra.mxu0 0.0
    %605 = vmatprep.subr.mxu0 0.0
    %606 = vmatpush2.msra.mxu0 0.0
    %607 = vmatprep.subr.mxu0 0.0
    %608 = vmatpush2.msra.mxu0 0.0
    %609 = vmatprep.subr.mxu0 0.0
    %610 = vmatpush2.msra.mxu0 0.0
    %611 = vmatprep.subr.mxu0 0.0
    %612 = vmatpush2.msra.mxu0 0.0
    %613 = vmatprep.subr.mxu0 0.0
    %614 = vmatpush2.msra.mxu0 0.0
    %615 = vmatprep.subr.mxu0 0.0
    %616 = vmatpush2.msra.mxu0 0.0
    %617 = vmatprep.subr.mxu0 0.0
    %618 = vmatpush2.msra.mxu0 0.0
    %619 = vmatprep.subr.mxu0 0.0
    %620 = vmatpush2.msra.mxu0 0.0
    %621 = vmatprep.subr.mxu0 0.0
    %622 = vmatpush2.msra.mxu0 0.0
    %623 = vmatprep.subr.mxu0 0.0
    %624 = vmatpush2.msra.mxu0 0.0
    %625 = vmatprep.subr.mxu0 0.0
    %626 = vmatpush2.msra.mxu0 0.0
    %627 = vmatprep.subr.mxu0 0.0
    %628 = vmatpush2.msra.mxu0 0.0
    %629 = vmatprep.mubr.f32.mxu0 0.0
    %630 = vmatmul.mubr.f32.gmra.mxu0 %v563
    %v631 = vpop.f32.mrf.mxu0
    %v632 = vadd.f32 %v561, %v631
    %v633 = vpop.f32.mrf.mxu0
    %634 = vdwg.mxu0
    %v635 = vand.u32 2147483647, %v632
    %v636 = vsub.f32 0.0, %v635
    %v637 = vmul.f32 %v636, 1.442695
    %v638 = vpow.pop %v637
    %v639 = vadd.f32 %v638, 1.0
    %v640 = vlog2.pop %v639
    %v641 = vmul.f32 %v640, 0.6931472
    %v642 = vmul.f32 -0.5, %v638
    %v643 = vadd.f32 %v642, 1.0
    %v644 = vmul.f32 %v643, %v638
    %v645 = vand.u32 2147483647, %v638
    %vm646 = vcmp.lt.f32.partialorder %v645, 0.0004427343
    %v647 = vsel %vm646, %v644, %v641
    %v648 = vmax.f32 %v632, 0.0
    %v649 = vadd.f32 %v647, %v648
    %v650 = vmul.f32 %v649, 0.999
    %v651 = vadd.f32 %v650, 0.001
    %v652 = vsub.f32 %v632, %v651
    %v653 = vlaneseq
    %v654 = vshrl.u32 %v653, 7
    %v655 = vsub.s32 1, %v654
    %v656 = vrot.slane %v16, %v655
    %v657 = vmul.f32 %v656, %v652
    %v658 = vadd.f32 %v651, %v657
    %vm659 = vcmask 254976
    %660 = vst.msk [vmem:[#allocation2] sm:$0x3] %vm659, %v658
    // Predicated region
    $region14: #{tpu_custom_call.1} parent=1 // pred_check
      _
    $region15: #{tpu_custom_call.1} parent=1 // pred_check_branch
      %662 = sbr.rel (0) target = $region17
    $region16: #{tpu_custom_call.1} parent=1 // pred_region
      %s664 = ssub.s32 32, 32
      %665 = vsyncadd [#allocation3], %s664
      %s667 = sshll.u32 [#allocation2], 4
      %s668 = int_to_ptr.vmem [resolvable:$true] %s667
      %670 = dma.vmem_to_hbm [thread:$0]  %s668, 32, %s3, [#allocation3]
    $region17: #{tpu_custom_call.1} parent=1 // pred_fallthru
      _
    // Predicated region
    $region18: #{tpu_custom_call.1} parent=1 // pred_check
      _
    $region19: #{tpu_custom_call.1} parent=1 // pred_check_branch
      %672 = sbr.rel (0) target = $region21
    $region20: #{tpu_custom_call.1} parent=1 // pred_region
      %673 = dma.done [#allocation3], 32
    $region21: #{tpu_custom_call.1} parent=1 // pred_fallthru
      _
    %674 = vsyncpa [#allocation3], 1

</llo_original>
